<compile_context>
chip_gen: v7x
topology: tpu7x:2x2x1
jax: 0.10.0
libtpu: 0.0.40
codegen_flags: <defaults>
</compile_context>

<pallas_src>
import functools

import jax
import jax.numpy as jnp
import numpy as np
from jax.experimental import pallas as pl
from jax.experimental.pallas import tpu as pltpu


# --------------------------------------------------------------------------- #
# Kernels
# --------------------------------------------------------------------------- #
def _pe_add_kernel(x_ref, pe_ref, o_ref):
    # x_ref: (TM, W), pe_ref: (1, W) broadcast over rows, o_ref: (TM, W)
    # Compute in the input dtype (bf16 stays bf16 on v6e/v7x; f32 stays f32).
    o_ref[...] = x_ref[...] + pe_ref[...].astype(x_ref.dtype)


def _pe_add_dropout_kernel(x_ref, pe_ref, u_ref, o_ref, *, p):
    # Inverted dropout: keep with prob (1-p), scale kept values by 1/(1-p).
    out = x_ref[...] + pe_ref[...].astype(x_ref.dtype)
    keep = u_ref[...] >= jnp.float32(p)
    scale = 1.0 / (1.0 - p)
    out = jnp.where(keep, out * scale, jnp.zeros_like(out))
    o_ref[...] = out.astype(o_ref.dtype)


# --------------------------------------------------------------------------- #
# Wrapper
# --------------------------------------------------------------------------- #
def make_positional_encoding_table(pad_size, embed):
    """Deterministic sinusoidal PE table, exactly as in the PyTorch __init__."""
    pos = np.arange(pad_size, dtype=np.float64)[:, None]
    i = np.arange(embed, dtype=np.float64)[None, :]
    angle = pos / np.power(10000.0, (np.floor(i / 2.0) * 2.0) / embed)
    pe = np.empty((pad_size, embed), dtype=np.float32)
    pe[:, 0::2] = np.sin(angle[:, 0::2])
    pe[:, 1::2] = np.cos(angle[:, 1::2])
    return jnp.asarray(pe)


def _choose_row_tile(n_rows, row_bytes, budget_bytes=2 * 1024 * 1024):
    """Rows per tile: whole array if tiny, else ~budget_bytes per tile
    (keeps (in + out) x 2 double-buffers well under VMEM even on v7x)."""
    tm = max(1, budget_bytes // max(row_bytes, 1))
    if tm >= n_rows:
        return n_rows                      # block dim == full dim is always legal
    return max(8, (tm // 8) * 8)           # sublane-aligned otherwise


def positional_encoding(x, pe, *, dropout_p=0.1, training=False, rng_key=None):
    """out = dropout(x + pe); x: (B, S, E), pe: (S, E)."""
    B, S, E = x.shape
    assert pe.shape == (S, E)

    if training and dropout_p >= 1.0:      # torch Dropout(p=1.0): all zeros
        return jnp.zeros_like(x)

    W = S * E
    x2 = x.reshape(B, W)                   # lane-dense last dim (W = 256 here)
    pe2 = pe.reshape(1, W)

    tm = _choose_row_tile(B, W * x2.dtype.itemsize)
    grid = (pl.cdiv(B, tm),)

    x_spec = pl.BlockSpec((tm, W), lambda i: (i, 0))
    pe_spec = pl.BlockSpec((1, W), lambda i: (0, 0))
    out_spec = pl.BlockSpec((tm, W), lambda i: (i, 0))
    cparams = pltpu.CompilerParams(dimension_semantics=("parallel",))

    if training and dropout_p > 0.0:
        if rng_key is None:
            rng_key = jax.random.PRNGKey(0)
        u = jax.random.uniform(rng_key, (B, W), dtype=jnp.float32)
        kernel = functools.partial(_pe_add_dropout_kernel, p=float(dropout_p))
        out2 = pl.pallas_call(
            kernel,
            out_shape=jax.ShapeDtypeStruct((B, W), x.dtype),
            grid=grid,
            in_specs=[x_spec, pe_spec, pl.BlockSpec((tm, W), lambda i: (i, 0))],
            out_specs=out_spec,
            compiler_params=cparams,
        )(x2, pe2, u)
    else:
        out2 = pl.pallas_call(
            _pe_add_kernel,
            out_shape=jax.ShapeDtypeStruct((B, W), x.dtype),
            grid=grid,
            in_specs=[x_spec, pe_spec],
            out_specs=out_spec,
            compiler_params=cparams,
        )(x2, pe2)

    return out2.reshape(B, S, E)


# --------------------------------------------------------------------------- #
# Self-test
# --------------------------------------------------------------------------- #
if __name__ == "__main__":
    # Module config: embed=32, pad_size=8, dropout=0.1
    batch, pad_size, embed = 2, 8, 32
    dropout_p = 0.1

    key = jax.random.PRNGKey(0)
    x = jax.random.normal(key, (batch, pad_size, embed), dtype=jnp.float32)
    pe = make_positional_encoding_table(pad_size, embed)

    # Inference-mode forward (dropout is identity) == PyTorch eval() semantics.
    out = positional_encoding(x, pe, dropout_p=dropout_p, training=False)
    out = jax.block_until_ready(out)

    ref = np.asarray(x) + np.asarray(pe)[None, :, :]
    np.testing.assert_allclose(np.asarray(out), ref, rtol=1e-6, atol=1e-6)

    # Training-mode (dropout) path: every output element must be either 0 or
    # (x + pe) / (1 - p).
    out_train = positional_encoding(
        x, pe, dropout_p=dropout_p, training=True, rng_key=jax.random.PRNGKey(42)
    )
    out_train = np.asarray(jax.block_until_ready(out_train))
    scaled = ref / (1.0 - dropout_p)
    ok = np.isclose(out_train, 0.0, atol=1e-6) | np.isclose(
        out_train, scaled, rtol=1e-5, atol=1e-6
    )
    assert ok.all(), "dropout output is neither 0 nor scaled (x + pe)"

    print("KERNEL_OK")
</pallas_src>

<mosaic_0001>
module attributes {stable_mosaic.version = 11 : i64} {
  func.func @_pe_add_kernel(%arg0: i32, %arg1: memref<2x256xf32, #tpu.memory_space<vmem>>, %arg2: memref<1x256xf32, #tpu.memory_space<vmem>>, %arg3: memref<2x256xf32, #tpu.memory_space<vmem>>) attributes {dimension_semantics = [#tpu.dimension_semantics<parallel>], iteration_bounds = array<i64: 1>, scalar_prefetch = 0 : i64, scratch_operands = 0 : i64, tpu.core_type = #tpu.core_type<tc>, window_params = [{transform_indices = @transform_0, window_bounds = array<i64: 2, 256>}, {pipeline_mode = #tpu.pipeline_mode<synchronous>, transform_indices = @transform_1, window_bounds = array<i64: 1, 256>}, {transform_indices = @transform_2, window_bounds = array<i64: 2, 256>}]} {
    %c0 = arith.constant 0 : index
    %c0_0 = arith.constant 0 : index
    %0 = vector.load %arg1[%c0, %c0_0] : memref<2x256xf32, #tpu.memory_space<vmem>>, vector<2x256xf32>
    %c0_1 = arith.constant 0 : index
    %c0_2 = arith.constant 0 : index
    %1 = vector.load %arg2[%c0_1, %c0_2] : memref<1x256xf32, #tpu.memory_space<vmem>>, vector<1x256xf32>
    %2 = vector.broadcast %1 : vector<1x256xf32> to vector<2x256xf32>
    %3 = arith.addf %0, %2 : vector<2x256xf32>
    %c0_3 = arith.constant 0 : index
    %c0_4 = arith.constant 0 : index
    %4 = vector.load %arg3[%c0_3, %c0_4] : memref<2x256xf32, #tpu.memory_space<vmem>>, vector<2x256xf32>
    tpu.vector_store %arg3[%c0_3, %c0_4], %3 {strides = array<i32>} : memref<2x256xf32, #tpu.memory_space<vmem>>, vector<2x256xf32>,
    return
  }
  func.func @transform_0(%arg0: i32) -> (i32, i32) {
    %c0_i32 = arith.constant 0 : i32
    %c0_i32_0 = arith.constant 0 : i32
    return %arg0, %c0_i32 : i32, i32
  }
  func.func @transform_1(%arg0: i32) -> (i32, i32) {
    %c0_i32 = arith.constant 0 : i32
    %c0_i32_0 = arith.constant 0 : i32
    %c0_i32_1 = arith.constant 0 : i32
    return %c0_i32, %c0_i32_0 : i32, i32
  }
  func.func @transform_2(%arg0: i32) -> (i32, i32) {
    %c0_i32 = arith.constant 0 : i32
    %c0_i32_0 = arith.constant 0 : i32
    return %arg0, %c0_i32 : i32, i32
  }
}

</mosaic_0001>

<llo_original>
// kernel: tpu_custom_call.1
$region0: #{tpu_custom_call.1}
  #allocation0 [shape = 'u32[]', space=smem, size = 0x4, offset = 0x4, fixed_abs, tag = 'smem constant byte address 0x4 - core index']
  #allocation1 [shape = 'u32[144,128]{1,0:T(1,128)}', space=vmem, size = 0x12000, scoped, tag = 'internal scratch']
  %s0 = inlined_call_operand.hbm [shape: f32[2,256], index: 0, kind: input, shape index: {}]
  %s1 = inlined_call_operand.vmem [shape: f32[1,256], index: 1, kind: input, shape index: {}]
  %s2 = inlined_call_operand.hbm [shape: f32[2,256], index: 2, kind: output, shape index: {}]
  %s3 = sld [smem:[#allocation0]]
  $region22: #{tpu_custom_call.1} parent=0
    _
  %s5 = ssub.s32 1, %s3
  %s6 = scalar_select 0, %s5, %s3
  $region1: #{tpu_custom_call.1} parent=0
    #allocation2 [shape = 'u8[2048]{0}', space=vmem, size = 0x800, scoped, tag = 'input window, operand 0, single buffered']
    #allocation3 [shape = 's32[1]{0}', space=sflag, size = 0x4, scoped, tag = 'scoped memory for tpu_custom_call.1']
    #allocation4 [shape = 's32[1]{0}', space=sflag, size = 0x4, scoped, tag = 'scoped memory for tpu_custom_call.1']
    #allocation5 [shape = 'u8[2048]{0}', space=vmem, size = 0x800, scoped, tag = 'output window, operand 0, single buffered']
    %7 = vsyncpa [#allocation3], 0
    %8 = vsyncpa [#allocation4], 0
    // Predicated region
    $region2: #{tpu_custom_call.1} parent=1 // pred_check
      _
    $region3: #{tpu_custom_call.1} parent=1 // pred_check_branch
      %10 = sbr.rel (0) target = $region5
    $region4: #{tpu_custom_call.1} parent=1 // pred_region
      %s12 = ssub.s32 64, 64
      %13 = vsyncadd [#allocation3], %s12
      %s15 = sshll.u32 [#allocation2], 4
      %s16 = int_to_ptr.vmem [resolvable:$true] %s15
      %18 = dma.hbm_to_vmem [thread:$0]  %s0, 64, %s16, [#allocation3]
    $region5: #{tpu_custom_call.1} parent=1 // pred_fallthru
      _
    // Predicated region
    $region6: #{tpu_custom_call.1} parent=1 // pred_check
      _
    $region7: #{tpu_custom_call.1} parent=1 // pred_check_branch
      %20 = sbr.rel (0) target = $region9
    $region8: #{tpu_custom_call.1} parent=1 // pred_region
      _
    $region9: #{tpu_custom_call.1} parent=1 // pred_fallthru
      _
    // Predicated region
    $region10: #{tpu_custom_call.1} parent=1 // pred_check
      _
    $region11: #{tpu_custom_call.1} parent=1 // pred_check_branch
      %22 = sbr.rel (0) target = $region13
    $region12: #{tpu_custom_call.1} parent=1 // pred_region
      %23 = dma.done [#allocation3], 64
    $region13: #{tpu_custom_call.1} parent=1 // pred_fallthru
      _
    %v24 = vld [vmem:[#allocation2] sm:$0xf]
    %v25 = vld [vmem:[%s1] sm:$0x3]
    %v27 = vlaneseq
    %v28 = vshrl.u32 %v27, 7
    %v29 = vsub.s32 0, %v28
    %v30 = vrot.slane %v25, %v29
    %v31 = vlaneseq
    %v32 = vshrl.u32 %v31, 7
    %v33 = vsub.s32 1, %v32
    %v34 = vrot.slane %v25, %v33
    %v35 = vcombine.low %v30, %v34
    %v37 = vunpack.c.l.s4 1983009808
    %v38 = vunpack.c.0.s8 %v37
    %v39 = vlaneseq
    %v40 = vshrl.u32 %v39, 7
    %v41 = vsub.s32 %v38, %v40
    %v42 = vrot.slane %v35, %v41
    %v44 = vadd.f32 %v24, %v42
    %45 = vst [vmem:[#allocation5] sm:$0xf] %v44
    // Predicated region
    $region14: #{tpu_custom_call.1} parent=1 // pred_check
      _
    $region15: #{tpu_custom_call.1} parent=1 // pred_check_branch
      %47 = sbr.rel (0) target = $region17
    $region16: #{tpu_custom_call.1} parent=1 // pred_region
      %s49 = ssub.s32 64, 64
      %50 = vsyncadd [#allocation4], %s49
      %s52 = sshll.u32 [#allocation5], 4
      %s53 = int_to_ptr.vmem [resolvable:$true] %s52
      %55 = dma.vmem_to_hbm [thread:$0]  %s53, 64, %s2, [#allocation4]
    $region17: #{tpu_custom_call.1} parent=1 // pred_fallthru
      _
    // Predicated region
    $region18: #{tpu_custom_call.1} parent=1 // pred_check
      _
    $region19: #{tpu_custom_call.1} parent=1 // pred_check_branch
      %57 = sbr.rel (0) target = $region21
    $region20: #{tpu_custom_call.1} parent=1 // pred_region
      %58 = dma.done [#allocation4], 64
    $region21: #{tpu_custom_call.1} parent=1 // pred_fallthru
      _
    %59 = vsyncpa [#allocation3], 1
    %60 = vsyncpa [#allocation4], 1

</llo_original>
